<compile_context>
chip_gen: v5e
topology: v5e:2x2
jax: 0.10.0
libtpu: 0.0.40
codegen_flags: <defaults>
</compile_context>

<pallas_src>
import functools
import math

import jax
import jax.numpy as jnp
from jax import lax
from jax.experimental import pallas as pl
from jax.experimental.pallas import tpu as pltpu

_EPS = 1e-12  # eps convention of the repo's _l2norm helper (x / (||x|| + eps))


def _similarity_kernel(q_ref, s_ref, o_ref, *, normalize):
    """One (batch, query-block) grid step.

    q_ref: (1, q_blk*M_q, c)          flattened, channel-last query locations
    s_ref: (1, c, n_way*M_s)          channel-first, n_way-fused support (RHS)
    o_ref: (1, q_blk*M_q, n_way*M_s)  lane-flat output block
    """
    qf = q_ref[0]  # [rows, c], no reshape needed
    if normalize:
        q32 = qf.astype(jnp.float32)
        ss = jnp.sum(q32 * q32, axis=-1, keepdims=True)
        # rsqrt issues on the EUP slot; eps guard only matters for all-zero
        # (padding) rows and differs from x/(||x||+eps) by ~1e-13 relative.
        inv = lax.rsqrt(jnp.maximum(ss, _EPS * _EPS))
        qf = (q32 * inv).astype(q_ref.dtype)

    res = lax.dot_general(
        qf,
        s_ref[0],
        dimension_numbers=(((1,), (0,)), ((), ())),
        preferred_element_type=jnp.float32,
    )  # [rows, n_way*M_s]  -- single MXU matmul, lane-dense N
    o_ref[0] = res.astype(o_ref.dtype)


def _ceil_to(x, m):
    return ((x + m - 1) // m) * m


def _vmem_budget():
    """(double-buffered block budget, vmem_limit_bytes) for this generation."""
    cap = 64 * 1024 * 1024  # conservative default (v7x per-TC VMEM)
    try:
        info = pltpu.get_tpu_info()
        got = getattr(info, "vmem_capacity_bytes", None)
        if got:
            cap = int(got)
    except Exception:
        pass
    vmem_limit = min((cap * 3) // 4, 100 * 1024 * 1024)
    budget = max(vmem_limit - 4 * 1024 * 1024, 8 * 1024 * 1024)
    return budget, vmem_limit


def _choose_q_block(q, m_q, c, n_fused, in_itemsize, out_itemsize, budget):
    """Queries per grid step.

    Keeps q_blk*M_q a multiple of 8 (sublane rule even for partial blocks),
    accounts for (8,128) VMEM tile padding + double buffering + in-kernel f32
    intermediates, and among feasible sizes minimizes (#steps, padded total).
    """
    step = 8 // math.gcd(m_q, 8)  # q_blk granularity so rows % 8 == 0
    row_target = 1024 if budget >= 48 * 1024 * 1024 else 256  # MXU rows / step

    lanes_c = _ceil_to(c, 128)
    lanes_n = _ceil_to(n_fused, 128)
    s_bytes = _ceil_to(c, 8) * lanes_n * in_itemsize

    def footprint(qb):
        rows = _ceil_to(qb * m_q, 8)
        q_bytes = rows * lanes_c * in_itemsize
        o_bytes = rows * lanes_n * out_itemsize
        interm = rows * (lanes_c + lanes_n) * 4  # f32 temps inside the kernel
        return 2 * (q_bytes + s_bytes + o_bytes) + interm  # x2 double buffering

    hi = _ceil_to(q, step)
    best = None
    qb = step
    while qb <= hi:
        if qb * m_q <= max(row_target, step * m_q) and footprint(qb) <= budget:
            steps = -(-q // qb)
            key = (steps, steps * qb)
            if best is None or key < best[0]:
                best = (key, qb)
        qb += step
    return step if best is None else best[1]


def innerproduct_similarity(
    support_xf, query_xf, *, n_way, k_shot, metric="cosine", out_dtype=jnp.float32
):
    """JAX/Pallas equivalent of InnerproductSimilarity.forward (5-D inputs)."""
    b, s_tot, c, h, w = support_xf.shape
    _, q, _, _, _ = query_xf.shape
    assert s_tot == n_way * k_shot
    M_q = h * w
    M_s = k_shot * h * w
    n_fused = n_way * M_s

    if metric == "cosine":
        normalize = True
    elif metric == "innerproduct":
        normalize = False
    else:
        # TODO(synk): 'euclidean' / 'neg_ed' metrics not implemented in Pallas.
        raise NotImplementedError(metric)

    compute_dtype = jnp.promote_types(query_xf.dtype, support_xf.dtype)

    # ---- glue (plain JAX): reproduce the PyTorch view/permute exactly ----
    # support: [b,s,c,h,w] -> [b,n_way,k_shot,c,h,w] -> permute -> [b,n_way,c,M_s]
    sup = support_xf.reshape(b, n_way, k_shot, c, h, w)
    sup = jnp.transpose(sup, (0, 1, 3, 2, 4, 5)).reshape(b, n_way, c, M_s)
    if normalize:
        sup32 = sup.astype(jnp.float32)
        sup32 = sup32 / (jnp.linalg.norm(sup32, axis=-2, keepdims=True) + _EPS)
        sup = sup32.astype(compute_dtype)  # keep bf16 operands bf16 on the MXU
    else:
        sup = sup.astype(compute_dtype)
    # Fuse n_way into the lane dim: [b, n_way, c, M_s] -> [b, c, n_way*M_s]
    sup = jnp.transpose(sup, (0, 2, 1, 3)).reshape(b, c, n_fused)

    # query: [b,q,c,h,w] -> [b,q,c,M_q] -> channel-last -> flat [b, q*M_q, c]
    qry = jnp.transpose(query_xf.reshape(b, q, c, M_q), (0, 1, 3, 2))
    qry = qry.reshape(b, q * M_q, c).astype(compute_dtype)

    in_itemsize = jnp.dtype(compute_dtype).itemsize
    out_itemsize = jnp.dtype(out_dtype).itemsize
    budget, vmem_limit = _vmem_budget()
    q_blk = _choose_q_block(q, M_q, c, n_fused, in_itemsize, out_itemsize, budget)
    q_pad = _ceil_to(q, q_blk)
    if q_pad != q:
        qry = jnp.pad(qry, ((0, 0), (0, (q_pad - q) * M_q), (0, 0)))

    grid = (b, q_pad // q_blk)
    rows_blk = q_blk * M_q

    kernel = functools.partial(_similarity_kernel, normalize=normalize)

    flops = 2 * b * q_pad * M_q * n_fused * c
    transcendentals = (b * q_pad * M_q) if normalize else 0
    bytes_accessed = (
        qry.size * in_itemsize
        + sup.size * in_itemsize
        + b * q_pad * M_q * n_fused * out_itemsize
    )

    out_flat = pl.pallas_call(
        kernel,
        out_shape=jax.ShapeDtypeStruct((b, q_pad * M_q, n_fused), out_dtype),
        grid_spec=pltpu.PrefetchScalarGridSpec(
            num_scalar_prefetch=0,
            grid=grid,
            in_specs=[
                # q_blk queries' locations, flattened & channel-last
                pl.BlockSpec((1, rows_blk, c), lambda bi, qi: (bi, qi, 0)),
                # full fused support for this batch item; block index only
                # depends on bi, so it is not re-DMA'd across the inner q axis.
                pl.BlockSpec((1, c, n_fused), lambda bi, qi: (bi, 0, 0)),
            ],
            out_specs=pl.BlockSpec(
                (1, rows_blk, n_fused), lambda bi, qi: (bi, qi, 0)
            ),
        ),
        compiler_params=pltpu.CompilerParams(
            dimension_semantics=("parallel", "parallel"),
            vmem_limit_bytes=vmem_limit,
        ),
        cost_estimate=pl.CostEstimate(
            flops=flops,
            transcendentals=transcendentals,
            bytes_accessed=bytes_accessed,
        ),
    )(qry, sup)

    # Recover [b, q, n_way, M_q, M_s] from the lane-flat kernel output.
    out = out_flat.reshape(b, q_pad, M_q, n_way, M_s)[:, :q]
    return jnp.transpose(out, (0, 1, 3, 2, 4))


def _reference(support_xf, query_xf, *, n_way, k_shot, metric="cosine"):
    """Pure-JAX reference mirroring the PyTorch forward."""
    b, s_tot, c, h, w = support_xf.shape
    _, q, _, _, _ = query_xf.shape
    M_q, M_s = h * w, k_shot * h * w
    sup = support_xf.reshape(b, n_way, k_shot, c, h, w)
    sup = jnp.transpose(sup, (0, 1, 3, 2, 4, 5)).reshape(b, n_way, c, M_s)
    qry = query_xf.reshape(b, q, c, M_q)
    if metric == "cosine":
        sup = sup / (jnp.linalg.norm(sup, axis=-2, keepdims=True) + _EPS)
        qry = qry / (jnp.linalg.norm(qry, axis=-2, keepdims=True) + _EPS)
    # out[b,q,n,i,j] = sum_c qry[b,q,c,i] * sup[b,n,c,j]
    return jnp.einsum(
        "bqci,bncj->bqnij", qry, sup, precision=lax.Precision.HIGHEST
    )


if __name__ == "__main__":
    # Small deterministic example (cfg.n_way=5, cfg.k_shot=1).
    n_way, k_shot = 5, 1
    b, q, c, h, w = 2, 4, 32, 4, 4
    s = n_way * k_shot

    key = jax.random.PRNGKey(0)
    k1, k2 = jax.random.split(key)
    support_xf = jax.random.normal(k1, (b, s, c, h, w), dtype=jnp.float32)
    query_xf = jax.random.normal(k2, (b, q, c, h, w), dtype=jnp.float32)
    # support_y / query_y are unused by the forward pass.

    out = innerproduct_similarity(
        support_xf, query_xf, n_way=n_way, k_shot=k_shot, metric="cosine"
    )
    out = jax.block_until_ready(out)

    ref = _reference(support_xf, query_xf, n_way=n_way, k_shot=k_shot, metric="cosine")
    assert out.shape == (b, q, n_way, h * w, k_shot * h * w), out.shape
    assert jnp.allclose(out, ref, atol=1e-4, rtol=1e-4), float(
        jnp.max(jnp.abs(out - ref))
    )

    # Also check the pure inner-product path.
    out_ip = innerproduct_similarity(
        support_xf, query_xf, n_way=n_way, k_shot=k_shot, metric="innerproduct"
    )
    out_ip = jax.block_until_ready(out_ip)
    ref_ip = _reference(
        support_xf, query_xf, n_way=n_way, k_shot=k_shot, metric="innerproduct"
    )
    assert jnp.allclose(out_ip, ref_ip, atol=1e-3, rtol=1e-3), float(
        jnp.max(jnp.abs(out_ip - ref_ip))
    )

    print("KERNEL_OK")
</pallas_src>

<mosaic_0001>
module attributes {stable_mosaic.version = 11 : i64} {
  func.func @_similarity_kernel(%arg0: i32, %arg1: i32, %arg2: memref<1x64x32xf32, #tpu.memory_space<vmem>>, %arg3: memref<1x32x80xf32, #tpu.memory_space<vmem>>, %arg4: memref<1x64x80xf32, #tpu.memory_space<vmem>>) attributes {dimension_semantics = [#tpu.dimension_semantics<parallel>, #tpu.dimension_semantics<parallel>], iteration_bounds = array<i64: 2, 1>, scalar_prefetch = 0 : i64, scratch_operands = 0 : i64, tpu.core_type = #tpu.core_type<tc>, window_params = [{transform_indices = @transform_0, window_bounds = array<i64: 1, 64, 32>}, {transform_indices = @transform_1, window_bounds = array<i64: 1, 32, 80>}, {transform_indices = @transform_2, window_bounds = array<i64: 1, 64, 80>}]} {
    %c0 = arith.constant 0 : index
    %c0_0 = arith.constant 0 : index
    %c0_1 = arith.constant 0 : index
    %0 = vector.load %arg2[%c0, %c0_0, %c0_1] : memref<1x64x32xf32, #tpu.memory_space<vmem>>, vector<1x64x32xf32>
    %1 = vector.shape_cast %0 : vector<1x64x32xf32> to vector<64x32xf32>
    %2 = arith.mulf %1, %1 : vector<64x32xf32>
    %cst = arith.constant dense<0.000000e+00> : vector<64xf32>
    %3 = vector.multi_reduction <add>, %2, %cst [1] : vector<64x32xf32> to vector<64xf32>
    %4 = vector.shape_cast %3 : vector<64xf32> to vector<64x1xf32>
    %cst_2 = arith.constant 1.000000e-24 : f32
    %5 = vector.broadcast %cst_2 : f32 to vector<64x1xf32>
    %6 = arith.maximumf %4, %5 : vector<64x1xf32>
    %7 = math.rsqrt %6 : vector<64x1xf32>
    %8 = vector.broadcast %7 : vector<64x1xf32> to vector<64x32xf32>
    %9 = arith.mulf %1, %8 : vector<64x32xf32>
    %c0_3 = arith.constant 0 : index
    %c0_4 = arith.constant 0 : index
    %c0_5 = arith.constant 0 : index
    %10 = vector.load %arg3[%c0_3, %c0_4, %c0_5] : memref<1x32x80xf32, #tpu.memory_space<vmem>>, vector<1x32x80xf32>
    %11 = vector.shape_cast %10 : vector<1x32x80xf32> to vector<32x80xf32>
    %cst_6 = arith.constant dense<0.000000e+00> : vector<64x80xf32>
    %12 = tpu.matmul %9, %11, %cst_6 {dimension_numbers = #tpu.dot_dimension_numbers<[1], [0], [0], [1], [0, 0, 1, 1], [], []>} : vector<64x32xf32>, vector<32x80xf32>, vector<64x80xf32> -> vector<64x80xf32>
    %c0_7 = arith.constant 0 : index
    %c0_8 = arith.constant 0 : index
    %c0_9 = arith.constant 0 : index
    %13 = vector.load %arg4[%c0_7, %c0_8, %c0_9] : memref<1x64x80xf32, #tpu.memory_space<vmem>>, vector<1x64x80xf32>
    %14 = vector.shape_cast %13 : vector<1x64x80xf32> to vector<64x80xf32>
    %15 = vector.shape_cast %12 : vector<64x80xf32> to vector<1x64x80xf32>
    tpu.vector_store %arg4[%c0_7, %c0_8, %c0_9], %15 {strides = array<i32>} : memref<1x64x80xf32, #tpu.memory_space<vmem>>, vector<1x64x80xf32>,
    return
  }
  func.func @transform_0(%arg0: i32, %arg1: i32) -> (i32, i32, i32) {
    %c0_i32 = arith.constant 0 : i32
    %c0_i32_0 = arith.constant 0 : i32
    return %arg0, %arg1, %c0_i32 : i32, i32, i32
  }
  func.func @transform_1(%arg0: i32, %arg1: i32) -> (i32, i32, i32) {
    %c0_i32 = arith.constant 0 : i32
    %c0_i32_0 = arith.constant 0 : i32
    %c0_i32_1 = arith.constant 0 : i32
    return %arg0, %c0_i32, %c0_i32_0 : i32, i32, i32
  }
  func.func @transform_2(%arg0: i32, %arg1: i32) -> (i32, i32, i32) {
    %c0_i32 = arith.constant 0 : i32
    %c0_i32_0 = arith.constant 0 : i32
    return %arg0, %arg1, %c0_i32 : i32, i32, i32
  }
}

</mosaic_0001>

<llo_original>
// kernel: tpu_custom_call.1
$region0: #{tpu_custom_call.1}
  #allocation0 [shape = 'u32[]', space=smem, size = 0x4, offset = 0x4, fixed_abs, tag = 'smem constant byte address 0x4 - core index']
  #allocation1 [shape = 'u32[72,128]{1,0:T(1,128)}', space=vmem, size = 0x9000, scoped, tag = 'internal scratch']
  %s0 = inlined_call_operand.vmem [shape: f32[2,64,32], index: 0, kind: input, shape index: {}]
  %s1 = inlined_call_operand.vmem [shape: f32[2,32,80], index: 1, kind: input, shape index: {}]
  %s2 = inlined_call_operand.hbm [shape: f32[2,64,80], index: 2, kind: output, shape index: {}]
  %s3 = sld [smem:[#allocation0]]
  $region41: #{tpu_custom_call.1} parent=0
    _
  %s5 = ssub.s32 1, %s3
  %s6 = scalar_select 0, %s5, %s3
  $region1: #{tpu_custom_call.1} parent=0
    #allocation2 [shape = 'u8[65536]{0}', space=vmem, size = 0x10000, scoped, tag = 'output window, operand 0']
    #allocation3 [shape = 's32[2]{0}', space=sflag, size = 0x8, scoped, tag = 'scoped memory for tpu_custom_call.1']
    %7 = vsyncpa [#allocation3], 0
    %s8 = scalar_lea.sflag [#allocation3], 1
    %9 = vsyncpa %s8, 0
    loop: start=0, step=1, limit=4
    $region2: #{tpu_custom_call.1} parent=1 // loop_pre_header
      _
    $region3: #{tpu_custom_call.1} parent=1 // loop_header
      %s11 = sphi 0, %s15
      %p12 = scmp.ge.s32.totalorder %s11, 4
      %s18 = sphi 0, %s30
      %s19 = sphi 0, %s26
      %s20 = sphi 0, %s18
      %s21 = sphi 0, %s19
      %s22 = sphi 0, %s20
      %s23 = sphi 0, %s21
      %s35 = sphi 0, %s37
      %s38 = sphi 0, %s35
      %s39 = sphi 0, %s38
      %s55 = sphi 0, %s39
      %s61 = sphi 0, %s63
      %s64 = sphi 0, %s61
      %s65 = sphi 0, %s64
      %s81 = sphi 0, %s65
      %s89 = sphi 0, %s91
      %s92 = sphi 0, %s89
      %s93 = sphi 0, %s92
      %s109 = sphi 0, %s93
    $region4: #{tpu_custom_call.1} parent=1 // loop_header_branch
      %14 = sbr.rel (%p12) target = $region8
    $region5: #{tpu_custom_call.1} parent=1 // loop_body
      %s16 = ssub.s32 %s11, 1
      %s17 = ssub.s32 %s11, 2
      %s24 = sadd.s32 1, %s19
      %p25 = scmp.ge.s32.totalorder %s24, 1
      %s26 = scalar_select %p25, 0, %s24
      %s27 = sadd.s32 1, %s18
      %s28 = scalar_select %p25, %s27, %s18
      %p29 = scmp.ge.s32.totalorder %s28, 2
      %s30 = scalar_select %p29, 0, %s28
      %s31 = ssub.s32 %s18, %s30
      %s32 = ssub.s32 %s19, %s26
      %s33 = sor.u32 %s31, %s32
      %p34 = scmp.eq.s32.totalorder %s33, 0
      %s36 = sadd.s32 %s35, 1
      %s37 = scalar_select %p34, %s35, %s36
      %p40 = pneg %p34
      %p41 = scmp.eq.s32.totalorder %s11, 1
      %p42 = por %p40, %p41
      %p43 = scmp.ne.s32.totalorder %s35, %s38
      %p44 = scmp.eq.s32.totalorder %s11, 0
      %p45 = por %p43, %p44
      %p46 = scmp.ne.s32.totalorder %s35, %s38
      %p47 = scmp.eq.s32.totalorder %s16, 1
      %p48 = por %p46, %p47
      %p49 = scmp.ne.s32.totalorder %s38, %s39
      %p50 = scmp.eq.s32.totalorder %s16, 0
      %p51 = por %p49, %p50
      %p52 = scmp.ne.s32.totalorder %s38, %s39
      %p53 = scmp.eq.s32.totalorder %s17, 1
      %p54 = por %p52, %p53
      %p56 = scmp.ne.s32.totalorder %s39, %s55
      %p57 = scmp.eq.s32.totalorder %s17, 0
      %p58 = por %p56, %p57
      %s59 = ssub.s32 %s18, %s30
      %p60 = scmp.eq.s32.totalorder %s59, 0
      %s62 = sadd.s32 %s61, 1
      %s63 = scalar_select %p60, %s61, %s62
      %p66 = pneg %p60
      %p67 = scmp.eq.s32.totalorder %s11, 1
      %p68 = por %p66, %p67
      %p69 = scmp.ne.s32.totalorder %s61, %s64
      %p70 = scmp.eq.s32.totalorder %s11, 0
      %p71 = por %p69, %p70
      %p72 = scmp.ne.s32.totalorder %s61, %s64
      %p73 = scmp.eq.s32.totalorder %s16, 1
      %p74 = por %p72, %p73
      %p75 = scmp.ne.s32.totalorder %s64, %s65
      %p76 = scmp.eq.s32.totalorder %s16, 0
      %p77 = por %p75, %p76
      %p78 = scmp.ne.s32.totalorder %s64, %s65
      %p79 = scmp.eq.s32.totalorder %s17, 1
      %p80 = por %p78, %p79
      %p82 = scmp.ne.s32.totalorder %s65, %s81
      %p83 = scmp.eq.s32.totalorder %s17, 0
      %p84 = por %p82, %p83
      %s85 = ssub.s32 %s18, %s30
      %s86 = ssub.s32 %s19, %s26
      %s87 = sor.u32 %s85, %s86
      %p88 = scmp.eq.s32.totalorder %s87, 0
      %s90 = sadd.s32 %s89, 1
      %s91 = scalar_select %p88, %s89, %s90
      %p94 = pneg %p88
      %p95 = scmp.eq.s32.totalorder %s11, 1
      %p96 = por %p94, %p95
      %p97 = scmp.ne.s32.totalorder %s89, %s92
      %p98 = scmp.eq.s32.totalorder %s11, 0
      %p99 = por %p97, %p98
      %p100 = scmp.ne.s32.totalorder %s89, %s92
      %p101 = scmp.eq.s32.totalorder %s16, 1
      %p102 = por %p100, %p101
      %p103 = scmp.ne.s32.totalorder %s92, %s93
      %p104 = scmp.eq.s32.totalorder %s16, 0
      %p105 = por %p103, %p104
      %p106 = scmp.ne.s32.totalorder %s92, %s93
      %p107 = scmp.eq.s32.totalorder %s17, 1
      %p108 = por %p106, %p107
      %p110 = scmp.ne.s32.totalorder %s93, %s109
      %p111 = scmp.eq.s32.totalorder %s17, 0
      %p112 = por %p110, %p111
      %p113 = scmp.le.s32.totalorder 1, %s11
      %p114 = scmp.lt.s32.totalorder %s11, 3
      %p115 = pnand %p113, %p114
      %p116 = pneg %p115
      // Predicated region
      $region9: #{tpu_custom_call.1} parent=5 // pred_check
        _
      $region10: #{tpu_custom_call.1} parent=5 // pred_check_branch
        %118 = sbr.rel (%p115) target = $region12
      $region11: #{tpu_custom_call.1} parent=5 // pred_region
        %s119 = ssub.s32 %s11, 1
      $region12: #{tpu_custom_call.1} parent=5 // pred_fallthru
        _
      %p120 = scmp.lt.s32.totalorder %s11, 2
      // Predicated region
      $region13: #{tpu_custom_call.1} parent=5 // pred_check
        %p121 = pneg %p120
      $region14: #{tpu_custom_call.1} parent=5 // pred_check_branch
        %123 = sbr.rel (%p121) target = $region16
      $region15: #{tpu_custom_call.1} parent=5 // pred_region
        // Predicated region
        $region17: #{tpu_custom_call.1} parent=15 // pred_check
          %p124 = pneg %p45
        $region18: #{tpu_custom_call.1} parent=15 // pred_check_branch
          %126 = sbr.rel (%p124) target = $region20
        $region19: #{tpu_custom_call.1} parent=15 // pred_region
          %s127 = smul.u32 8, %s19
          %p128 = scmp.lt.s32.totalorder %s18, 1
          %s129 = scalar_select %p128, %s18, 1
          %p130 = scmp.lt.s32.totalorder %s127, 7
          %s131 = scalar_select %p130, %s127, 7
          %s132 = smul.addr %s129, 8
          %s133 = sadd.s32 %s131, %s132
          %s134 = smul.addr %s133, 8
          %s135 = scalar_lea.vmem %s0, %s134
          %s136 = smul.u32 8, %s19
        $region20: #{tpu_custom_call.1} parent=15 // pred_fallthru
          _
        // Predicated region
        $region21: #{tpu_custom_call.1} parent=15 // pred_check
          %p137 = pneg %p71
        $region22: #{tpu_custom_call.1} parent=15 // pred_check_branch
          %139 = sbr.rel (%p137) target = $region24
        $region23: #{tpu_custom_call.1} parent=15 // pred_region
          %p140 = scmp.lt.s32.totalorder %s18, 1
          %s141 = scalar_select %p140, %s18, 1
          %s142 = smul.addr %s141, 4
          %s143 = smul.addr %s142, 8
          %s144 = scalar_lea.vmem %s1, %s143
        $region24: #{tpu_custom_call.1} parent=15 // pred_fallthru
          _
      $region16: #{tpu_custom_call.1} parent=5 // pred_fallthru
        _
      %p145 = scmp.le.s32.totalorder 1, %s11
      %p146 = scmp.lt.s32.totalorder %s11, 3
      %p147 = pnand %p145, %p146
      %p148 = pneg %p147
      // Predicated region
      $region25: #{tpu_custom_call.1} parent=5 // pred_check
        _
      $region26: #{tpu_custom_call.1} parent=5 // pred_check_branch
        %150 = sbr.rel (%p147) target = $region28
      $region27: #{tpu_custom_call.1} parent=5 // pred_region
        %s151 = ssub.s32 %s11, 1
        %s152 = smul.u32 8, %s21
        %p153 = scmp.lt.s32.totalorder %s20, 1
        %s154 = scalar_select %p153, %s20, 1
        %p155 = scmp.lt.s32.totalorder %s152, 7
        %s156 = scalar_select %p155, %s152, 7
        %s157 = smul.addr %s154, 8
        %s158 = sadd.s32 %s156, %s157
        %s159 = smul.addr %s158, 8
        %s160 = scalar_lea.vmem %s0, %s159
        %p161 = pneg %p51
        %p162 = pneg %p48
        %p163 = scmp.lt.s32.totalorder %s20, 1
        %s164 = scalar_select %p163, %s20, 1
        %s165 = smul.addr %s164, 4
        %s166 = smul.addr %s165, 8
        %s167 = scalar_lea.vmem %s1, %s166
        %p168 = pneg %p77
        %p169 = pneg %p74
        %p170 = pneg %p105
        %p171 = pneg %p102
        %s172 = sand.u32 %s92, 1
        %s173 = scalar_lea.sflag [#allocation3], %s172
        %s174 = sand.u32 %s92, 1
        %s175 = smul.addr %s174, 64
        %s176 = scalar_lea.vmem [#allocation2], %s175
        %s177 = smul.u32 8, %s21
        %p178 = scmp.lt.s32.totalorder %s20, 1
        %s179 = scalar_select %p178, %s20, 1
        %p180 = scmp.lt.s32.totalorder %s177, 7
        %s181 = scalar_select %p180, %s177, 7
        %s182 = smul.addr %s179, 8
        %s183 = sadd.s32 %s181, %s182
        %s184 = smul.addr %s183, 8
        %s185 = scalar_lea.vmem %s0, %s184
        %s186 = smul.u32 8, %s21
        %p187 = scmp.lt.s32.totalorder %s20, 1
        %s188 = scalar_select %p187, %s20, 1
        %s189 = smul.addr %s188, 4
        %s190 = smul.addr %s189, 8
        %s191 = scalar_lea.vmem %s1, %s190
        %s192 = smul.u32 8, %s21
        %v193 = vld [vmem:[%s185] sm:$0xff]
        %v194 = vld [vmem:[%s185 + $0x8] sm:$0xff]
        %v195 = vld [vmem:[%s185 + $0x10] sm:$0xff]
        %v196 = vld [vmem:[%s185 + $0x18] sm:$0xff]
        %v197 = vld [vmem:[%s185 + $0x20] sm:$0xff]
        %v198 = vld [vmem:[%s185 + $0x28] sm:$0xff]
        %v199 = vld [vmem:[%s185 + $0x30] sm:$0xff]
        %v200 = vld [vmem:[%s185 + $0x38] sm:$0xff]
        %v201 = vmul.f32 %v193, %v193
        %v202 = vmul.f32 %v194, %v194
        %v203 = vmul.f32 %v195, %v195
        %v204 = vmul.f32 %v196, %v196
        %v205 = vmul.f32 %v197, %v197
        %v206 = vmul.f32 %v198, %v198
        %v207 = vmul.f32 %v199, %v199
        %v208 = vmul.f32 %v200, %v200
        %vm209 = vcmask 261120
        %v210 = vsel %vm209, %v201, 0.0
        %211 = vadd.xlane.f32.xlu0 %v210
        %v212 = vpop.xlane.xlu0 %211
        %v213 = vsel %vm209, %v202, 0.0
        %214 = vadd.xlane.f32.xlu0 %v213
        %v215 = vpop.xlane.xlu0 %214
        %v216 = vsel %vm209, %v203, 0.0
        %217 = vadd.xlane.f32.xlu0 %v216
        %v218 = vpop.xlane.xlu0 %217
        %v219 = vsel %vm209, %v204, 0.0
        %220 = vadd.xlane.f32.xlu0 %v219
        %v221 = vpop.xlane.xlu0 %220
        %v222 = vsel %vm209, %v205, 0.0
        %223 = vadd.xlane.f32.xlu0 %v222
        %v224 = vpop.xlane.xlu0 %223
        %v225 = vsel %vm209, %v206, 0.0
        %226 = vadd.xlane.f32.xlu0 %v225
        %v227 = vpop.xlane.xlu0 %226
        %v228 = vsel %vm209, %v207, 0.0
        %229 = vadd.xlane.f32.xlu0 %v228
        %v230 = vpop.xlane.xlu0 %229
        %v231 = vsel %vm209, %v208, 0.0
        %232 = vadd.xlane.f32.xlu0 %v231
        %v233 = vpop.xlane.xlu0 %232
        %v234 = vmax.f32 %v212, 1e-24
        %v235 = vmax.f32 %v215, 1e-24
        %v236 = vmax.f32 %v218, 1e-24
        %v237 = vmax.f32 %v221, 1e-24
        %v238 = vmax.f32 %v224, 1e-24
        %v239 = vmax.f32 %v227, 1e-24
        %v240 = vmax.f32 %v230, 1e-24
        %v241 = vmax.f32 %v233, 1e-24
        %v242 = vrsqrt.pop %v234
        %v243 = vmul.f32 %v242, %v234
        %v244 = vmul.f32 %v243, %v242
        %v245 = vmul.f32 0.5, %v244
        %v246 = vsub.f32 1.5, %v245
        %v247 = vmul.f32 %v242, %v246
        %vm248 = vweird.f32 %v234
        %vm249 = vweird.f32 %v242
        %vm250 = vmor %vm248, %vm249
        %v251 = vsel %vm250, %v242, %v247
        %v252 = vrsqrt.pop %v235
        %v253 = vmul.f32 %v252, %v235
        %v254 = vmul.f32 %v253, %v252
        %v255 = vmul.f32 0.5, %v254
        %v256 = vsub.f32 1.5, %v255
        %v257 = vmul.f32 %v252, %v256
        %vm258 = vweird.f32 %v235
        %vm259 = vweird.f32 %v252
        %vm260 = vmor %vm258, %vm259
        %v261 = vsel %vm260, %v252, %v257
        %v262 = vrsqrt.pop %v236
        %v263 = vmul.f32 %v262, %v236
        %v264 = vmul.f32 %v263, %v262
        %v265 = vmul.f32 0.5, %v264
        %v266 = vsub.f32 1.5, %v265
        %v267 = vmul.f32 %v262, %v266
        %vm268 = vweird.f32 %v236
        %vm269 = vweird.f32 %v262
        %vm270 = vmor %vm268, %vm269
        %v271 = vsel %vm270, %v262, %v267
        %v272 = vrsqrt.pop %v237
        %v273 = vmul.f32 %v272, %v237
        %v274 = vmul.f32 %v273, %v272
        %v275 = vmul.f32 0.5, %v274
        %v276 = vsub.f32 1.5, %v275
        %v277 = vmul.f32 %v272, %v276
        %vm278 = vweird.f32 %v237
        %vm279 = vweird.f32 %v272
        %vm280 = vmor %vm278, %vm279
        %v281 = vsel %vm280, %v272, %v277
        %v282 = vrsqrt.pop %v238
        %v283 = vmul.f32 %v282, %v238
        %v284 = vmul.f32 %v283, %v282
        %v285 = vmul.f32 0.5, %v284
        %v286 = vsub.f32 1.5, %v285
        %v287 = vmul.f32 %v282, %v286
        %vm288 = vweird.f32 %v238
        %vm289 = vweird.f32 %v282
        %vm290 = vmor %vm288, %vm289
        %v291 = vsel %vm290, %v282, %v287
        %v292 = vrsqrt.pop %v239
        %v293 = vmul.f32 %v292, %v239
        %v294 = vmul.f32 %v293, %v292
        %v295 = vmul.f32 0.5, %v294
        %v296 = vsub.f32 1.5, %v295
        %v297 = vmul.f32 %v292, %v296
        %vm298 = vweird.f32 %v239
        %vm299 = vweird.f32 %v292
        %vm300 = vmor %vm298, %vm299
        %v301 = vsel %vm300, %v292, %v297
        %v302 = vrsqrt.pop %v240
        %v303 = vmul.f32 %v302, %v240
        %v304 = vmul.f32 %v303, %v302
        %v305 = vmul.f32 0.5, %v304
        %v306 = vsub.f32 1.5, %v305
        %v307 = vmul.f32 %v302, %v306
        %vm308 = vweird.f32 %v240
        %vm309 = vweird.f32 %v302
        %vm310 = vmor %vm308, %vm309
        %v311 = vsel %vm310, %v302, %v307
        %v312 = vrsqrt.pop %v241
        %v313 = vmul.f32 %v312, %v241
        %v314 = vmul.f32 %v313, %v312
        %v315 = vmul.f32 0.5, %v314
        %v316 = vsub.f32 1.5, %v315
        %v317 = vmul.f32 %v312, %v316
        %vm318 = vweird.f32 %v241
        %vm319 = vweird.f32 %v312
        %vm320 = vmor %vm318, %vm319
        %v321 = vsel %vm320, %v312, %v317
        %v322 = vmul.f32 %v193, %v251
        %v323 = vmul.f32 %v194, %v261
        %v324 = vmul.f32 %v195, %v271
        %v325 = vmul.f32 %v196, %v281
        %v326 = vmul.f32 %v197, %v291
        %v327 = vmul.f32 %v198, %v301
        %v328 = vmul.f32 %v199, %v311
        %v329 = vmul.f32 %v200, %v321
        %v330 = vld [vmem:[%s191] sm:$0xff]
        %v331 = vld [vmem:[%s191 + $0x8] sm:$0xff]
        %v332 = vld [vmem:[%s191 + $0x10] sm:$0xff]
        %v333 = vld [vmem:[%s191 + $0x18] sm:$0xff]
        %v335 = vsel %vm209, %v322, 0
        %v338 = vsel %vm209, %v323, 0
        %v341 = vsel %vm209, %v324, 0
        %v344 = vsel %vm209, %v325, 0
        %v347 = vsel %vm209, %v326, 0
        %v350 = vsel %vm209, %v327, 0
        %v353 = vsel %vm209, %v328, 0
        %v356 = vsel %vm209, %v329, 0
        %358 = vmatpush.msra.mxu0 0.0
        %359 = vmatpush.msra.mxu0 0.0
        %360 = vmatpush.msra.mxu0 0.0
        %361 = vmatpush.msra.mxu0 0.0
        %362 = vmatpush.msra.mxu0 0.0
        %363 = vmatpush.msra.mxu0 0.0
        %364 = vmatpush.msra.mxu0 0.0
        %365 = vmatpush.msra.mxu0 0.0
        %366 = vmatpush.msra.mxu0 0.0
        %367 = vmatpush.msra.mxu0 0.0
        %368 = vmatpush.msra.mxu0 0.0
        %369 = vmatpush.msra.mxu0 0.0
        %370 = vmatpush.msra.mxu0 %v333
        %371 = vmatpush.msra.mxu0 %v332
        %372 = vmatpush.msra.mxu0 %v331
        %373 = vmatpush.msra.mxu0 %v330
        %374 = vmatmul.f32.gmra.mxu0 %v335
        %v375 = vpop.f32.mrf.mxu0
        %v376 = vadd.f32 0.0, %v375
        %377 = vmatmul.f32.gmra.mxu0 %v338
        %v378 = vpop.f32.mrf.mxu0
        %v379 = vadd.f32 0.0, %v378
        %380 = vmatmul.f32.gmra.mxu0 %v341
        %v381 = vpop.f32.mrf.mxu0
        %v382 = vadd.f32 0.0, %v381
        %383 = vmatmul.f32.gmra.mxu0 %v344
        %v384 = vpop.f32.mrf.mxu0
        %v385 = vadd.f32 0.0, %v384
        %386 = vmatmul.f32.gmra.mxu0 %v347
        %v387 = vpop.f32.mrf.mxu0
        %v388 = vadd.f32 0.0, %v387
        %389 = vmatmul.f32.gmra.mxu0 %v350
        %v390 = vpop.f32.mrf.mxu0
        %v391 = vadd.f32 0.0, %v390
        %392 = vmatmul.f32.gmra.mxu0 %v353
        %v393 = vpop.f32.mrf.mxu0
        %v394 = vadd.f32 0.0, %v393
        %395 = vmatmul.f32.gmra.mxu0 %v356
        %v396 = vpop.f32.mrf.mxu0
        %v397 = vadd.f32 0.0, %v396
        %398 = vdwg.mxu0
        %vm399 = vcmask 654336
        %400 = vst.msk [vmem:[%s176] sm:$0xff] %vm399, %v376
        %401 = vst.msk [vmem:[%s176 + $0x8] sm:$0xff] %vm399, %v379
        %402 = vst.msk [vmem:[%s176 + $0x10] sm:$0xff] %vm399, %v382
        %403 = vst.msk [vmem:[%s176 + $0x18] sm:$0xff] %vm399, %v385
        %404 = vst.msk [vmem:[%s176 + $0x20] sm:$0xff] %vm399, %v388
        %405 = vst.msk [vmem:[%s176 + $0x28] sm:$0xff] %vm399, %v391
        %406 = vst.msk [vmem:[%s176 + $0x30] sm:$0xff] %vm399, %v394
        %407 = vst.msk [vmem:[%s176 + $0x38] sm:$0xff] %vm399, %v397
        %s408 = sand.u32 %s92, 1
        %s409 = scalar_lea.sflag [#allocation3], %s408
        %s410 = sand.u32 %s92, 1
        %s411 = smul.addr %s410, 64
        %s412 = scalar_lea.vmem [#allocation2], %s411
        // Predicated region
        $region29: #{tpu_custom_call.1} parent=27 // pred_check
          %p413 = pneg %p102
        $region30: #{tpu_custom_call.1} parent=27 // pred_check_branch
          %415 = sbr.rel (%p413) target = $region32
        $region31: #{tpu_custom_call.1} parent=27 // pred_region
          %s416 = smul.u32 8, %s21
          %418 = vsyncadd %s409, 0
          %s419 = smul.addr %s20, 8
          %s420 = sadd.s32 %s416, %s419
          %s421 = smul.addr %s420, 8
          %s422 = scalar_lea.hbm %s2, %s421
          %s423 = sshll.u32 %s412, 4
          %s424 = int_to_ptr.vmem [resolvable:$true] %s423
          %s425 = sshll.u32 %s422, 4
          %s426 = int_to_ptr.hbm [resolvable:$true] %s425
          %431 = dma.vmem_to_hbm [thread:$0]  %s424, 1024, %s426, %s409, 128, 128, 8
        $region32: #{tpu_custom_call.1} parent=27 // pred_fallthru
          _
      $region28: #{tpu_custom_call.1} parent=5 // pred_fallthru
        _
      %p432 = scmp.le.s32.totalorder 2, %s11
      // Predicated region
      $region33: #{tpu_custom_call.1} parent=5 // pred_check
        %p433 = pneg %p432
      $region34: #{tpu_custom_call.1} parent=5 // pred_check_branch
        %435 = sbr.rel (%p433) target = $region36
      $region35: #{tpu_custom_call.1} parent=5 // pred_region
        %s436 = ssub.s32 %s11, 2
        // Predicated region
        $region37: #{tpu_custom_call.1} parent=35 // pred_check
          %p437 = pneg %p108
        $region38: #{tpu_custom_call.1} parent=35 // pred_check_branch
          %439 = sbr.rel (%p437) target = $region40
        $region39: #{tpu_custom_call.1} parent=35 // pred_region
          %s440 = sand.u32 %s93, 1
          %s441 = scalar_lea.sflag [#allocation3], %s440
          %s442 = sand.u32 %s93, 1
          %s443 = smul.addr %s442, 64
          %s444 = scalar_lea.vmem [#allocation2], %s443
          %446 = dma.done %s441, 1024
        $region40: #{tpu_custom_call.1} parent=35 // pred_fallthru
          _
      $region36: #{tpu_custom_call.1} parent=5 // pred_fallthru
        _
    $region6: #{tpu_custom_call.1} parent=1 // loop_footer
      %s15 = sadd.s32 1, %s11
    $region7: #{tpu_custom_call.1} parent=1 // loop_footer_branch
      %10 = sbr.rel target = $region3
    $region8: #{tpu_custom_call.1} parent=1 // loop_exit
      _
    %447 = vsyncpa [#allocation3], 1
    %s448 = scalar_lea.sflag [#allocation3], 1
    %449 = vsyncpa %s448, 1

</llo_original>
